<compile_context>
chip_gen: v7x
topology: tpu7x:2x2x1
jax: 0.10.0
libtpu: 0.0.40
codegen_flags: <defaults>
</compile_context>

<pallas_src>
import functools

import jax
import jax.numpy as jnp
from jax.experimental import pallas as pl
from jax.experimental.pallas import tpu as pltpu


# Budget (bytes) for one (input block + output block) pair.  Double buffering
# makes ~2x this resident, which stays well inside v5e's 16 MiB default scoped
# VMEM and far inside v6e/v7x limits.
_BLOCK_BUDGET_BYTES = 4 * 1024 * 1024
_VMEM_LIMIT_BYTES = 32 * 1024 * 1024
# Soft minimum number of grid steps (keeps both v7x TensorCores busy and the
# DMA pipeline overlapped).
_TARGET_MIN_STEPS = 4


def _largest_divisor_leq(n, cap):
    """Largest divisor of n that is <= cap (always >= 1)."""
    cap = max(1, min(n, cap))
    for d in range(cap, 0, -1):
        if n % d == 0:
            return d
    return 1


# ---------------------------------------------------------------------------
# Kernel bodies: each copies a statically-sliced view of the input VMEM block
# into the output VMEM block; Pallas' automatic double-buffered pipeline does
# all HBM <-> VMEM movement.
# ---------------------------------------------------------------------------
def _crop_d_kernel(x_ref, o_ref, *, cl, cr):
    # Pure-D crop, lane-dense: x_ref (Tbc, D, W*H), o_ref (Tbc, D_out, W*H).
    D = x_ref.shape[1]
    o_ref[...] = x_ref[:, cl:D - cr, :]


def _crop_dwh_kernel(x_ref, o_ref, *, cl, cr, ct, cb, cf, cba):
    # Whole-volume crop: x_ref (Tbc, D, W, H), o_ref (Tbc, D_out, W_out, H_out).
    _, D, W, H = x_ref.shape
    o_ref[...] = x_ref[:, cl:D - cr, ct:W - cb, cf:H - cba]


def _crop_wh_kernel(x_ref, o_ref, *, ct, cb, cf, cba):
    # Per-D-plane fallback: x_ref (Tbc, 1, W, H), o_ref (Tbc, 1, W_out, H_out).
    W, H = x_ref.shape[2], x_ref.shape[3]
    o_ref[...] = x_ref[:, :, ct:W - cb, cf:H - cba]


def crop_3d_pallas(x, crop_size, *, block_budget_bytes=_BLOCK_BUDGET_BYTES):
    """Pallas implementation of torchex crop_3d.

    x:         (B, C, D, W, H) array
    crop_size: 6-tuple (crop_left, crop_right, crop_top, crop_bottom,
                        crop_front, crop_back) of static Python ints.
    """
    assert x.ndim == 5, "expected (B, C, D, W, H)"
    cl, cr, ct, cb, cf, cba = (int(c) for c in crop_size)
    B, C, D, W, H = x.shape
    D_out = D - cl - cr
    W_out = W - ct - cb
    H_out = H - cf - cba
    assert D_out > 0 and W_out > 0 and H_out > 0, "crop larger than input"

    BC = B * C
    itemsize = x.dtype.itemsize
    d_only = (ct == 0 and cb == 0 and cf == 0 and cba == 0)

    vol_in = D * W * H * itemsize               # per (b, c) input volume
    vol_out = D_out * W_out * H_out * itemsize  # per (b, c) output volume

    if (vol_in + vol_out) <= block_budget_bytes:
        # -------- Whole-volume path: batch Tbc (b, c) volumes per step. ----
        cap_budget = max(1, block_budget_bytes // (vol_in + vol_out))
        cap_steps = max(1, BC // _TARGET_MIN_STEPS)
        tbc = _largest_divisor_leq(BC, min(cap_budget, cap_steps))
        grid = (BC // tbc,)
        dim_sem = ("parallel",)

        if d_only:
            # Lane-dense: fold (W, H) -> W*H so the last (lane) dim is large
            # and stores are unmasked; kernel is a pure slab copy along D.
            WH = W * H
            x_view = x.reshape(BC, D, WH)
            kernel = functools.partial(_crop_d_kernel, cl=cl, cr=cr)
            in_specs = [pl.BlockSpec((tbc, D, WH), lambda g: (g, 0, 0))]
            out_specs = pl.BlockSpec((tbc, D_out, WH), lambda g: (g, 0, 0))
            out_shape = jax.ShapeDtypeStruct((BC, D_out, WH), x.dtype)
        else:
            x_view = x.reshape(BC, D, W, H)
            kernel = functools.partial(_crop_dwh_kernel, cl=cl, cr=cr,
                                       ct=ct, cb=cb, cf=cf, cba=cba)
            in_specs = [pl.BlockSpec((tbc, D, W, H), lambda g: (g, 0, 0, 0))]
            out_specs = pl.BlockSpec((tbc, D_out, W_out, H_out),
                                     lambda g: (g, 0, 0, 0))
            out_shape = jax.ShapeDtypeStruct((BC, D_out, W_out, H_out),
                                             x.dtype)

        in_block_bytes = tbc * vol_in
        out_block_bytes = tbc * vol_out
        bytes_accessed = BC * (vol_in + vol_out)
    else:
        # -------- Fallback: one D plane per step, batched over Tbc (b, c). --
        # D block size is 1, so the index_map applies the +crop_left element
        # offset directly (no alignment requirement on crop_left).
        plane_in = W * H * itemsize
        plane_out = W_out * H_out * itemsize
        cap_budget = max(1, block_budget_bytes // (plane_in + plane_out))
        tbc = _largest_divisor_leq(BC, cap_budget)
        grid = (BC // tbc, D_out)
        dim_sem = ("parallel", "parallel")

        x_view = x.reshape(BC, D, W, H)
        kernel = functools.partial(_crop_wh_kernel,
                                   ct=ct, cb=cb, cf=cf, cba=cba)
        in_specs = [pl.BlockSpec((tbc, 1, W, H),
                                 lambda g, d: (g, d + cl, 0, 0))]
        out_specs = pl.BlockSpec((tbc, 1, W_out, H_out),
                                 lambda g, d: (g, d, 0, 0))
        out_shape = jax.ShapeDtypeStruct((BC, D_out, W_out, H_out), x.dtype)

        in_block_bytes = tbc * plane_in
        out_block_bytes = tbc * plane_out
        bytes_accessed = BC * D_out * (plane_in + plane_out)

    vmem_limit = max(_VMEM_LIMIT_BYTES,
                     2 * (in_block_bytes + out_block_bytes) + (1 << 20))

    out = pl.pallas_call(
        kernel,
        out_shape=out_shape,
        grid_spec=pltpu.PrefetchScalarGridSpec(
            num_scalar_prefetch=0,
            grid=grid,
            in_specs=in_specs,
            out_specs=out_specs,
        ),
        compiler_params=pltpu.CompilerParams(
            dimension_semantics=dim_sem,
            vmem_limit_bytes=int(vmem_limit),
        ),
        cost_estimate=pl.CostEstimate(
            flops=0,
            transcendentals=0,
            bytes_accessed=int(bytes_accessed),
        ),
    )(x_view)

    return out.reshape(B, C, D_out, W_out, H_out)


class Crop3d:
    """JAX/Pallas counterpart of torchex.nn.Crop3d (no parameters)."""

    def __init__(self, crop_size):
        assert len(crop_size) == 6
        self.crop_size = tuple(int(c) for c in crop_size)

    def __call__(self, x):
        return crop_3d_pallas(x, self.crop_size)


if __name__ == "__main__":
    key = jax.random.PRNGKey(0)
    B, C, D, W, H = 2, 3, 6, 10, 12
    x = jax.random.normal(key, (B, C, D, W, H), dtype=jnp.float32)

    def ref_crop(x, crop_size):
        cl, cr, ct, cb, cf, cba = crop_size
        _, _, D, W, H = x.shape
        return x[:, :, cl:D - cr, ct:W - cb, cf:H - cba]

    # 1) General crop on all three spatial dims (whole-volume path).
    cs1 = (1, 1, 2, 1, 1, 2)
    out1 = jax.block_until_ready(Crop3d(cs1)(x))
    ref1 = ref_crop(x, cs1)
    assert out1.shape == ref1.shape and out1.dtype == ref1.dtype
    assert jnp.array_equal(out1, ref1), "general crop mismatch"

    # 2) Pure-D crop (lane-dense folded path).
    cs2 = (1, 2, 0, 0, 0, 0)
    out2 = jax.block_until_ready(Crop3d(cs2)(x))
    assert jnp.array_equal(out2, ref_crop(x, cs2)), "D-only crop mismatch"

    # 3) Force the per-plane fallback path (used for very large volumes) by
    #    shrinking the block budget, to exercise it at small shapes.
    out3 = jax.block_until_ready(crop_3d_pallas(x, cs1, block_budget_bytes=1))
    assert jnp.array_equal(out3, ref1), "fallback crop mismatch"

    print("KERNEL_OK")
</pallas_src>

<mosaic_0001>
module attributes {stable_mosaic.version = 11 : i64} {
  func.func @_crop_dwh_kernel(%arg0: i32, %arg1: memref<1x6x10x12xf32, #tpu.memory_space<vmem>>, %arg2: memref<1x4x7x9xf32, #tpu.memory_space<vmem>>) attributes {dimension_semantics = [#tpu.dimension_semantics<parallel>], iteration_bounds = array<i64: 6>, scalar_prefetch = 0 : i64, scratch_operands = 0 : i64, tpu.core_type = #tpu.core_type<tc>, window_params = [{transform_indices = @transform_0, window_bounds = array<i64: 1, 6, 10, 12>}, {transform_indices = @transform_1, window_bounds = array<i64: 1, 4, 7, 9>}]} {
    %c0 = arith.constant 0 : index
    %c1 = arith.constant 1 : index
    %c2 = arith.constant 2 : index
    %c1_0 = arith.constant 1 : index
    %0 = vector.load %arg1[%c0, %c1, %c2, %c1_0] : memref<1x6x10x12xf32, #tpu.memory_space<vmem>>, vector<1x4x7x9xf32>
    %c0_1 = arith.constant 0 : index
    %c0_2 = arith.constant 0 : index
    %c0_3 = arith.constant 0 : index
    %c0_4 = arith.constant 0 : index
    %1 = vector.load %arg2[%c0_1, %c0_2, %c0_3, %c0_4] : memref<1x4x7x9xf32, #tpu.memory_space<vmem>>, vector<1x4x7x9xf32>
    tpu.vector_store %arg2[%c0_1, %c0_2, %c0_3, %c0_4], %0 {strides = array<i32>} : memref<1x4x7x9xf32, #tpu.memory_space<vmem>>, vector<1x4x7x9xf32>,
    return
  }
  func.func @transform_0(%arg0: i32) -> (i32, i32, i32, i32) {
    %c0_i32 = arith.constant 0 : i32
    %c0_i32_0 = arith.constant 0 : i32
    %c0_i32_1 = arith.constant 0 : i32
    %c0_i32_2 = arith.constant 0 : i32
    return %arg0, %c0_i32, %c0_i32_0, %c0_i32_1 : i32, i32, i32, i32
  }
  func.func @transform_1(%arg0: i32) -> (i32, i32, i32, i32) {
    %c0_i32 = arith.constant 0 : i32
    %c0_i32_0 = arith.constant 0 : i32
    %c0_i32_1 = arith.constant 0 : i32
    %c0_i32_2 = arith.constant 0 : i32
    return %arg0, %c0_i32, %c0_i32_0, %c0_i32_1 : i32, i32, i32, i32
  }
}

</mosaic_0001>

<llo_original>
// kernel: tpu_custom_call.1
$region0: #{tpu_custom_call.1}
  #allocation0 [shape = 'u32[]', space=smem, size = 0x4, offset = 0x4, fixed_abs, tag = 'smem constant byte address 0x4 - core index']
  #allocation1 [shape = 'u32[144,128]{1,0:T(1,128)}', space=vmem, size = 0x12000, scoped, tag = 'internal scratch']
  %s0 = inlined_call_operand.vmem [shape: f32[6,6,10,12], index: 0, kind: input, shape index: {}]
  %s1 = inlined_call_operand.vmem [shape: f32[6,4,7,9], index: 1, kind: output, shape index: {}]
  %s2 = sld [smem:[#allocation0]]
  $region37: #{tpu_custom_call.1} parent=0
    _
  %s4 = ssub.s32 1, %s2
  %s5 = scalar_select 0, %s4, %s2
  loop: start=0, step=1, limit=8
  $region2: #{tpu_custom_call.1} parent=0 // loop_pre_header
    _
  $region3: #{tpu_custom_call.1} parent=0 // loop_header
    %s7 = sphi 0, %s11
    %p8 = scmp.ge.s32.totalorder %s7, 8
    %s17 = sphi 0, %s19
    %s20 = sphi 0, %s17
    %s21 = sphi 0, %s20
    %s37 = sphi 0, %s21
    %s43 = sphi 0, %s45
    %s46 = sphi 0, %s43
    %s47 = sphi 0, %s46
    %s63 = sphi 0, %s47
  $region4: #{tpu_custom_call.1} parent=0 // loop_header_branch
    %10 = sbr.rel (%p8) target = $region8
  $region5: #{tpu_custom_call.1} parent=0 // loop_body
    %s12 = ssub.s32 %s7, 1
    %s13 = ssub.s32 %s7, 2
    %s14 = sadd.s32 %s7, 1
    %s15 = ssub.s32 %s7, %s14
    %p16 = scmp.eq.s32.totalorder %s15, 0
    %s18 = sadd.s32 %s17, 1
    %s19 = scalar_select %p16, %s17, %s18
    %p22 = pneg %p16
    %p23 = scmp.eq.s32.totalorder %s7, 5
    %p24 = por %p22, %p23
    %p25 = scmp.ne.s32.totalorder %s17, %s20
    %p26 = scmp.eq.s32.totalorder %s7, 0
    %p27 = por %p25, %p26
    %p28 = scmp.ne.s32.totalorder %s17, %s20
    %p29 = scmp.eq.s32.totalorder %s12, 5
    %p30 = por %p28, %p29
    %p31 = scmp.ne.s32.totalorder %s20, %s21
    %p32 = scmp.eq.s32.totalorder %s12, 0
    %p33 = por %p31, %p32
    %p34 = scmp.ne.s32.totalorder %s20, %s21
    %p35 = scmp.eq.s32.totalorder %s13, 5
    %p36 = por %p34, %p35
    %p38 = scmp.ne.s32.totalorder %s21, %s37
    %p39 = scmp.eq.s32.totalorder %s13, 0
    %p40 = por %p38, %p39
    %s41 = ssub.s32 %s7, %s14
    %p42 = scmp.eq.s32.totalorder %s41, 0
    %s44 = sadd.s32 %s43, 1
    %s45 = scalar_select %p42, %s43, %s44
    %p48 = pneg %p42
    %p49 = scmp.eq.s32.totalorder %s7, 5
    %p50 = por %p48, %p49
    %p51 = scmp.ne.s32.totalorder %s43, %s46
    %p52 = scmp.eq.s32.totalorder %s7, 0
    %p53 = por %p51, %p52
    %p54 = scmp.ne.s32.totalorder %s43, %s46
    %p55 = scmp.eq.s32.totalorder %s12, 5
    %p56 = por %p54, %p55
    %p57 = scmp.ne.s32.totalorder %s46, %s47
    %p58 = scmp.eq.s32.totalorder %s12, 0
    %p59 = por %p57, %p58
    %p60 = scmp.ne.s32.totalorder %s46, %s47
    %p61 = scmp.eq.s32.totalorder %s13, 5
    %p62 = por %p60, %p61
    %p64 = scmp.ne.s32.totalorder %s47, %s63
    %p65 = scmp.eq.s32.totalorder %s13, 0
    %p66 = por %p64, %p65
    %p67 = scmp.le.s32.totalorder 1, %s7
    %p68 = scmp.lt.s32.totalorder %s7, 7
    %p69 = pnand %p67, %p68
    %p70 = pneg %p69
    // Predicated region
    $region9: #{tpu_custom_call.1} parent=5 // pred_check
      _
    $region10: #{tpu_custom_call.1} parent=5 // pred_check_branch
      %72 = sbr.rel (%p69) target = $region12
    $region11: #{tpu_custom_call.1} parent=5 // pred_region
      %s73 = ssub.s32 %s7, 1
    $region12: #{tpu_custom_call.1} parent=5 // pred_fallthru
      _
    %p74 = scmp.lt.s32.totalorder %s7, 6
    // Predicated region
    $region13: #{tpu_custom_call.1} parent=5 // pred_check
      %p75 = pneg %p74
    $region14: #{tpu_custom_call.1} parent=5 // pred_check_branch
      %77 = sbr.rel (%p75) target = $region16
    $region15: #{tpu_custom_call.1} parent=5 // pred_region
      // Predicated region
      $region17: #{tpu_custom_call.1} parent=15 // pred_check
        %p78 = pneg %p27
      $region18: #{tpu_custom_call.1} parent=15 // pred_check_branch
        %80 = sbr.rel (%p78) target = $region20
      $region19: #{tpu_custom_call.1} parent=15 // pred_region
        %p81 = scmp.lt.s32.totalorder %s7, 5
        %s82 = scalar_select %p81, %s7, 5
        %s83 = smul.addr %s82, 12
        %s84 = smul.addr %s83, 8
        %s85 = scalar_lea.vmem %s0, %s84
      $region20: #{tpu_custom_call.1} parent=15 // pred_fallthru
        _
    $region16: #{tpu_custom_call.1} parent=5 // pred_fallthru
      _
    %p86 = scmp.le.s32.totalorder 1, %s7
    %p87 = scmp.lt.s32.totalorder %s7, 7
    %p88 = pnand %p86, %p87
    %p89 = pneg %p88
    // Predicated region
    $region21: #{tpu_custom_call.1} parent=5 // pred_check
      _
    $region22: #{tpu_custom_call.1} parent=5 // pred_check_branch
      %91 = sbr.rel (%p88) target = $region24
    $region23: #{tpu_custom_call.1} parent=5 // pred_region
      %s92 = ssub.s32 %s7, 1
      %p93 = scmp.lt.s32.totalorder %s12, 5
      %s94 = scalar_select %p93, %s12, 5
      %s95 = smul.addr %s94, 12
      %s96 = smul.addr %s95, 8
      %s97 = scalar_lea.vmem %s0, %s96
      %p98 = pneg %p33
      %p99 = pneg %p30
      %p100 = pneg %p59
      %p101 = pneg %p56
      %p102 = scmp.lt.s32.totalorder %s12, 5
      %s103 = scalar_select %p102, %s12, 5
      %s104 = smul.addr %s103, 4
      %s105 = smul.addr %s104, 8
      %s106 = scalar_lea.vmem %s1, %s105
      %p107 = scmp.lt.s32.totalorder %s12, 5
      %s108 = scalar_select %p107, %s12, 5
      %s109 = smul.addr %s108, 12
      %s110 = smul.addr %s109, 8
      %s111 = scalar_lea.vmem %s0, %s110
      %p112 = scmp.lt.s32.totalorder %s12, 5
      %s113 = scalar_select %p112, %s12, 5
      %s114 = smul.addr %s113, 4
      %s115 = smul.addr %s114, 8
      %s116 = scalar_lea.vmem %s1, %s115
      %s117 = scalar_lea.vmem %s111, 16
      %v118 = vld [vmem:[%s117 + $0x2] sm:$0x7f]
      %v119 = vld [vmem:[%s117 + $0x12] sm:$0x7f]
      %v120 = vld [vmem:[%s117 + $0x22] sm:$0x7f]
      %v121 = vld [vmem:[%s117 + $0x32] sm:$0x7f]
      %126 = vrot.lane.b32.xlu0 %v118, 127
      %v127 = vpop.permute.xlu0 %126
      %128 = vrot.lane.b32.xlu0 %v119, 127
      %v129 = vpop.permute.xlu0 %128
      %130 = vrot.lane.b32.xlu0 %v120, 127
      %v131 = vpop.permute.xlu0 %130
      %132 = vrot.lane.b32.xlu0 %v121, 127
      %v133 = vpop.permute.xlu0 %132
      %vm138 = vcmask 71680
      %139 = vst.msk [vmem:[%s116] sm:$0x7f] %vm138, %v127
      %140 = vst.msk [vmem:[%s116 + $0x8] sm:$0x7f] %vm138, %v129
      %141 = vst.msk [vmem:[%s116 + $0x10] sm:$0x7f] %vm138, %v131
      %142 = vst.msk [vmem:[%s116 + $0x18] sm:$0x7f] %vm138, %v133
      %p143 = scmp.lt.s32.totalorder %s12, 5
      %s144 = scalar_select %p143, %s12, 5
      %s145 = smul.addr %s144, 4
      %s146 = smul.addr %s145, 8
      %s147 = scalar_lea.vmem %s1, %s146
      // Predicated region
      $region25: #{tpu_custom_call.1} parent=23 // pred_check
        %p148 = pneg %p56
      $region26: #{tpu_custom_call.1} parent=23 // pred_check_branch
        %150 = sbr.rel (%p148) target = $region28
      $region27: #{tpu_custom_call.1} parent=23 // pred_region
        _
      $region28: #{tpu_custom_call.1} parent=23 // pred_fallthru
        _
    $region24: #{tpu_custom_call.1} parent=5 // pred_fallthru
      _
    %p151 = scmp.le.s32.totalorder 2, %s7
    // Predicated region
    $region29: #{tpu_custom_call.1} parent=5 // pred_check
      %p152 = pneg %p151
    $region30: #{tpu_custom_call.1} parent=5 // pred_check_branch
      %154 = sbr.rel (%p152) target = $region32
    $region31: #{tpu_custom_call.1} parent=5 // pred_region
      %s155 = ssub.s32 %s7, 2
      // Predicated region
      $region33: #{tpu_custom_call.1} parent=31 // pred_check
        %p156 = pneg %p62
      $region34: #{tpu_custom_call.1} parent=31 // pred_check_branch
        %158 = sbr.rel (%p156) target = $region36
      $region35: #{tpu_custom_call.1} parent=31 // pred_region
        %p159 = scmp.lt.s32.totalorder %s13, 5
        %s160 = scalar_select %p159, %s13, 5
        %s161 = smul.addr %s160, 4
        %s162 = smul.addr %s161, 8
        %s163 = scalar_lea.vmem %s1, %s162
      $region36: #{tpu_custom_call.1} parent=31 // pred_fallthru
        _
    $region32: #{tpu_custom_call.1} parent=5 // pred_fallthru
      _
  $region6: #{tpu_custom_call.1} parent=0 // loop_footer
    %s11 = sadd.s32 1, %s7
  $region7: #{tpu_custom_call.1} parent=0 // loop_footer_branch
    %6 = sbr.rel target = $region3
  $region8: #{tpu_custom_call.1} parent=0 // loop_exit
    _

</llo_original>
